<compile_context>
chip_gen: v5e
topology: v5e:2x2
jax: 0.10.0
libtpu: 0.0.40
codegen_flags: <defaults>
</compile_context>

<pallas_src>
import functools

import jax
import jax.numpy as jnp
import numpy as np
from jax.experimental import pallas as pl
from jax.experimental.pallas import tpu as pltpu

_LANES = 128


def _fsq_kernel(x_ref, lm1_ref, step_ref, q_ref, i_ref):
    """Closed-form uniform-grid FSQ quantizer with per-lane levels.

    lm1_ref : (1, 128) f32, (level - 1) for the feature dim owned by each lane.
    step_ref: (1, 128) f32, 2 / (level - 1) for each lane.
    """
    x = x_ref[...].astype(jnp.float32)            # (R, 128)
    lm1 = lm1_ref[...]                            # (1, 128), broadcasts over rows
    step = step_ref[...]

    # t in [0, level-1] for x in [-1, 1]; ceil(t - 0.5) rounds exact midpoints
    # DOWN, reproducing torch.argmin's first-minimum tie-break.
    t = (x + 1.0) * (lm1 * 0.5)
    idx_f = jnp.clip(jnp.ceil(t - 0.5), 0.0, lm1)

    q_ref[...] = (idx_f * step - 1.0).astype(q_ref.dtype)
    i_ref[...] = idx_f.astype(jnp.int32).astype(jnp.int8)


def _round_up(n, m):
    return ((n + m - 1) // m) * m


def _fsq_quantize_impl(x, levels, block_rows):
    dim = len(levels)
    assert x.shape[-1] == dim, "last axis of input must equal len(levels)"
    assert _LANES % dim == 0, "len(levels) must divide 128 for lane-dense layout"

    input_shape = x.shape
    total = int(np.prod(input_shape))
    rows_exact = pl.cdiv(total, _LANES)

    # Row alignment: f32 tiles need multiples of 8; once the grid is tiled
    # (multi-block) use 32-row multiples so every block -- including a clamped
    # tail block -- is made of whole int8 (32, 128) tiles.
    if rows_exact >= 64:
        rows = _round_up(rows_exact, 32)
        # Cap the block so there are >= 2 grid steps (v7x megacore sharding).
        br = min(_round_up(block_rows, 32), _round_up(pl.cdiv(rows, 2), 32))
    else:
        rows = _round_up(rows_exact, 8)
        br = rows                                   # single full-extent block

    total_pad = rows * _LANES
    flat = x.reshape(-1)
    if total_pad != total:
        # TODO(synk): for very large unaligned inputs, mask the ragged tail
        # inside the kernel instead of this host-side pad/slice pass.
        flat = jnp.pad(flat, (0, total_pad - total))
    x2d = flat.reshape(rows, _LANES)                # lane l <-> feature dim (l % dim)

    # Per-lane constants, passed as (1, 128) inputs (NOT captured in the trace).
    lm1_np = np.zeros((1, _LANES), np.float32)
    step_np = np.zeros((1, _LANES), np.float32)
    for d, lvl in enumerate(levels):
        lm1_np[0, d::dim] = float(lvl - 1)
        step_np[0, d::dim] = 2.0 / float(max(lvl - 1, 1))
    lm1 = jnp.asarray(lm1_np)
    step = jnp.asarray(step_np)

    grid = (pl.cdiv(rows, br),)
    row_spec = pl.BlockSpec((br, _LANES), lambda i: (i, 0))
    const_spec = pl.BlockSpec((1, _LANES), lambda i: (0, 0))

    q2d, i2d = pl.pallas_call(
        _fsq_kernel,
        out_shape=(
            jax.ShapeDtypeStruct((rows, _LANES), x.dtype),
            jax.ShapeDtypeStruct((rows, _LANES), jnp.int8),
        ),
        grid_spec=pltpu.PrefetchScalarGridSpec(
            num_scalar_prefetch=0,
            grid=grid,
            in_specs=[row_spec, const_spec, const_spec],
            out_specs=[
                pl.BlockSpec((br, _LANES), lambda i: (i, 0)),
                pl.BlockSpec((br, _LANES), lambda i: (i, 0)),
            ],
        ),
        compiler_params=pltpu.CompilerParams(
            dimension_semantics=("parallel",),
            vmem_limit_bytes=48 * 1024 * 1024,
        ),
    )(x2d, lm1, step)

    if total_pad != total:
        q2d = q2d.reshape(-1)[:total]
        i2d = i2d.reshape(-1)[:total]
    quantized = q2d.reshape(input_shape)
    indices = i2d.reshape(input_shape[:-1] + (dim,))
    return quantized, indices


# Straight-through estimator: forward returns the quantized values directly
# (no extra XLA elementwise pass); backward passes the gradient straight to x.
@functools.partial(jax.custom_vjp, nondiff_argnums=(1, 2))
def _fsq_quantize(x, levels, block_rows):
    return _fsq_quantize_impl(x, levels, block_rows)


def _fsq_quantize_fwd(x, levels, block_rows):
    return _fsq_quantize_impl(x, levels, block_rows), None


def _fsq_quantize_bwd(levels, block_rows, _residual, cotangents):
    g_q, _g_idx = cotangents
    return (g_q,)


_fsq_quantize.defvjp(_fsq_quantize_fwd, _fsq_quantize_bwd)


def fsq_forward(x, levels, *, block_rows=4096):
    """FSQ forward. Returns dict matching the PyTorch module's outputs."""
    levels = tuple(int(l) for l in levels)
    quantized, indices = _fsq_quantize(x, levels, block_rows)
    zero = jnp.zeros((), jnp.float32)
    return {
        "quantized": quantized,
        "vq_loss": zero,
        "commit_loss": zero,
        # int8 (levels < 128); torch returns int64 -- cast only where consumed.
        "indices": indices,
    }


def _fsq_reference(x, levels):
    """Pure-JAX reference mirroring the PyTorch per-dim argmin loop."""
    dim = len(levels)
    flat = x.reshape(-1, dim)
    q_cols, i_cols = [], []
    for d, lvl in enumerate(levels):
        b = jnp.asarray(np.linspace(-1.0, 1.0, lvl, dtype=np.float32))
        dist = jnp.abs(flat[:, d:d + 1] - b[None, :])
        idx = jnp.argmin(dist, axis=1)
        q_cols.append(b[idx][:, None])
        i_cols.append(idx.astype(jnp.int32)[:, None])
    q = jnp.concatenate(q_cols, axis=1).reshape(x.shape)
    i = jnp.concatenate(i_cols, axis=1).reshape(x.shape[:-1] + (dim,))
    return q, i


if __name__ == "__main__":
    levels = [8, 5, 5, 5]           # dim = 4
    key = jax.random.PRNGKey(0)
    # Small example: batch=2, spatial=16x16, feature dim = len(levels) = 4 (channel-last).
    x = jax.random.uniform(key, (2, 16, 16, 4), dtype=jnp.float32,
                           minval=-1.5, maxval=1.5)

    out = fsq_forward(x, levels)
    jax.block_until_ready(out["quantized"])
    jax.block_until_ready(out["indices"])

    q_ref, i_ref = _fsq_reference(x, levels)
    assert jnp.allclose(out["quantized"], q_ref, atol=1e-6), "quantized mismatch"
    assert jnp.array_equal(out["indices"].astype(jnp.int32), i_ref), "indices mismatch"
    assert float(out["vq_loss"]) == 0.0 and float(out["commit_loss"]) == 0.0

    print("KERNEL_OK")
</pallas_src>

<mosaic_0001>
module attributes {stable_mosaic.version = 11 : i64} {
  func.func @_fsq_kernel(%arg0: i32, %arg1: memref<16x128xf32, #tpu.memory_space<vmem>>, %arg2: memref<1x128xf32, #tpu.memory_space<vmem>>, %arg3: memref<1x128xf32, #tpu.memory_space<vmem>>, %arg4: memref<16x128xf32, #tpu.memory_space<vmem>>, %arg5: memref<16x128xi8, #tpu.memory_space<vmem>>) attributes {dimension_semantics = [#tpu.dimension_semantics<parallel>], iteration_bounds = array<i64: 1>, scalar_prefetch = 0 : i64, scratch_operands = 0 : i64, tpu.core_type = #tpu.core_type<tc>, window_params = [{transform_indices = @transform_0, window_bounds = array<i64: 16, 128>}, {pipeline_mode = #tpu.pipeline_mode<synchronous>, transform_indices = @transform_1, window_bounds = array<i64: 1, 128>}, {pipeline_mode = #tpu.pipeline_mode<synchronous>, transform_indices = @transform_2, window_bounds = array<i64: 1, 128>}, {transform_indices = @transform_3, window_bounds = array<i64: 16, 128>}, {transform_indices = @transform_4, window_bounds = array<i64: 16, 128>}]} {
    %c0 = arith.constant 0 : index
    %c0_0 = arith.constant 0 : index
    %0 = vector.load %arg1[%c0, %c0_0] : memref<16x128xf32, #tpu.memory_space<vmem>>, vector<16x128xf32>
    %c0_1 = arith.constant 0 : index
    %c0_2 = arith.constant 0 : index
    %1 = vector.load %arg2[%c0_1, %c0_2] : memref<1x128xf32, #tpu.memory_space<vmem>>, vector<1x128xf32>
    %c0_3 = arith.constant 0 : index
    %c0_4 = arith.constant 0 : index
    %2 = vector.load %arg3[%c0_3, %c0_4] : memref<1x128xf32, #tpu.memory_space<vmem>>, vector<1x128xf32>
    %cst = arith.constant 1.000000e+00 : f32
    %3 = vector.broadcast %cst : f32 to vector<16x128xf32>
    %4 = arith.addf %0, %3 : vector<16x128xf32>
    %cst_5 = arith.constant 5.000000e-01 : f32
    %5 = vector.broadcast %cst_5 : f32 to vector<1x128xf32>
    %6 = arith.mulf %1, %5 : vector<1x128xf32>
    %7 = vector.broadcast %6 : vector<1x128xf32> to vector<16x128xf32>
    %8 = arith.mulf %4, %7 : vector<16x128xf32>
    %cst_6 = arith.constant 5.000000e-01 : f32
    %9 = vector.broadcast %cst_6 : f32 to vector<16x128xf32>
    %10 = arith.subf %8, %9 : vector<16x128xf32>
    %11 = math.ceil %10 : vector<16x128xf32>
    %cst_7 = arith.constant 0.000000e+00 : f32
    %12 = vector.broadcast %cst_7 : f32 to vector<16x128xf32>
    %13 = arith.maximumf %12, %11 : vector<16x128xf32>
    %14 = vector.broadcast %1 : vector<1x128xf32> to vector<16x128xf32>
    %15 = arith.minimumf %14, %13 : vector<16x128xf32>
    %16 = vector.broadcast %2 : vector<1x128xf32> to vector<16x128xf32>
    %17 = arith.mulf %15, %16 : vector<16x128xf32>
    %cst_8 = arith.constant 1.000000e+00 : f32
    %18 = vector.broadcast %cst_8 : f32 to vector<16x128xf32>
    %19 = arith.subf %17, %18 : vector<16x128xf32>
    %c0_9 = arith.constant 0 : index
    %c0_10 = arith.constant 0 : index
    %20 = vector.load %arg4[%c0_9, %c0_10] : memref<16x128xf32, #tpu.memory_space<vmem>>, vector<16x128xf32>
    tpu.vector_store %arg4[%c0_9, %c0_10], %19 {strides = array<i32>} : memref<16x128xf32, #tpu.memory_space<vmem>>, vector<16x128xf32>,
    %21 = arith.fptosi %15 : vector<16x128xf32> to vector<16x128xi32>
    %22 = arith.trunci %21 : vector<16x128xi32> to vector<16x128xi8>
    %c0_11 = arith.constant 0 : index
    %c0_12 = arith.constant 0 : index
    %23 = vector.load %arg5[%c0_11, %c0_12] : memref<16x128xi8, #tpu.memory_space<vmem>>, vector<16x128xi8>
    tpu.vector_store %arg5[%c0_11, %c0_12], %22 {strides = array<i32>} : memref<16x128xi8, #tpu.memory_space<vmem>>, vector<16x128xi8>,
    return
  }
  func.func @transform_0(%arg0: i32) -> (i32, i32) {
    %c0_i32 = arith.constant 0 : i32
    %c0_i32_0 = arith.constant 0 : i32
    return %arg0, %c0_i32 : i32, i32
  }
  func.func @transform_1(%arg0: i32) -> (i32, i32) {
    %c0_i32 = arith.constant 0 : i32
    %c0_i32_0 = arith.constant 0 : i32
    %c0_i32_1 = arith.constant 0 : i32
    return %c0_i32, %c0_i32_0 : i32, i32
  }
  func.func @transform_2(%arg0: i32) -> (i32, i32) {
    %c0_i32 = arith.constant 0 : i32
    %c0_i32_0 = arith.constant 0 : i32
    %c0_i32_1 = arith.constant 0 : i32
    return %c0_i32, %c0_i32_0 : i32, i32
  }
  func.func @transform_3(%arg0: i32) -> (i32, i32) {
    %c0_i32 = arith.constant 0 : i32
    %c0_i32_0 = arith.constant 0 : i32
    return %arg0, %c0_i32 : i32, i32
  }
  func.func @transform_4(%arg0: i32) -> (i32, i32) {
    %c0_i32 = arith.constant 0 : i32
    %c0_i32_0 = arith.constant 0 : i32
    return %arg0, %c0_i32 : i32, i32
  }
}

</mosaic_0001>

<llo_original>
// kernel: tpu_custom_call.1
$region0: #{tpu_custom_call.1}
  #allocation0 [shape = 'u32[]', space=smem, size = 0x4, offset = 0x4, fixed_abs, tag = 'smem constant byte address 0x4 - core index']
  #allocation1 [shape = 'u32[72,128]{1,0:T(1,128)}', space=vmem, size = 0x9000, scoped, tag = 'internal scratch']
  %s0 = inlined_call_operand.hbm [shape: f32[16,128], index: 0, kind: input, shape index: {}]
  %s1 = inlined_call_operand.hbm [shape: f32[1,128], index: 1, kind: input, shape index: {}]
  %s2 = inlined_call_operand.vmem [shape: f32[1,128], index: 2, kind: input, shape index: {}]
  %s3 = inlined_call_operand.hbm [shape: f32[16,128], index: 3, kind: output, shape index: {0}]
  %s4 = inlined_call_operand.hbm [shape: s8[16,128], index: 4, kind: output, shape index: {1}]
  %5 = xla_tuple %s3, %s4
  %s6 = sld [smem:[#allocation0]]
  $region38: #{tpu_custom_call.1} parent=0
    _
  %s8 = ssub.s32 1, %s6
  %s9 = scalar_select 0, %s8, %s6
  $region1: #{tpu_custom_call.1} parent=0
    #allocation2 [shape = 'u8[8192]{0}', space=vmem, size = 0x2000, scoped, tag = 'input window, operand 0, single buffered']
    #allocation3 [shape = 's32[1]{0}', space=sflag, size = 0x4, scoped, tag = 'scoped memory for tpu_custom_call.1']
    #allocation4 [shape = 's32[1]{0}', space=sflag, size = 0x4, scoped, tag = 'scoped memory for tpu_custom_call.1']
    #allocation5 [shape = 'u8[512]{0}', space=vmem, size = 0x400, scoped, tag = 'input window, operand 1, single buffered']
    #allocation6 [shape = 's32[1]{0}', space=sflag, size = 0x4, scoped, tag = 'scoped memory for tpu_custom_call.1']
    #allocation7 [shape = 'u8[8192]{0}', space=vmem, size = 0x2000, scoped, tag = 'output window, operand 0, single buffered']
    #allocation8 [shape = 'u8[2048]{0}', space=vmem, size = 0x800, scoped, tag = 'output window, operand 1, single buffered']
    #allocation9 [shape = 's32[1]{0}', space=sflag, size = 0x4, scoped, tag = 'scoped memory for tpu_custom_call.1']
    %10 = vsyncpa [#allocation3], 0
    %11 = vsyncpa [#allocation6], 0
    %12 = vsyncpa [#allocation4], 0
    %13 = vsyncpa [#allocation9], 0
    // Predicated region
    $region2: #{tpu_custom_call.1} parent=1 // pred_check
      _
    $region3: #{tpu_custom_call.1} parent=1 // pred_check_branch
      %15 = sbr.rel (0) target = $region5
    $region4: #{tpu_custom_call.1} parent=1 // pred_region
      %17 = vsyncadd [#allocation3], 0
      %s18 = sshll.u32 %s0, 4
      %s19 = int_to_ptr.hbm [resolvable:$true] %s18
      %s20 = sshll.u32 [#allocation2], 4
      %s21 = int_to_ptr.vmem [resolvable:$true] %s20
      %26 = dma.hbm_to_vmem [thread:$0]  %s19, 256, %s21, [#allocation3], 128, 128, 8
    $region5: #{tpu_custom_call.1} parent=1 // pred_fallthru
      _
    // Predicated region
    $region6: #{tpu_custom_call.1} parent=1 // pred_check
      _
    $region7: #{tpu_custom_call.1} parent=1 // pred_check_branch
      %28 = sbr.rel (0) target = $region9
    $region8: #{tpu_custom_call.1} parent=1 // pred_region
      %30 = vsyncadd [#allocation6], 0
      %s32 = sshll.u32 %s1, 4
      %s33 = int_to_ptr.hbm [resolvable:$true] %s32
      %s34 = sshll.u32 [#allocation5], 4
      %s35 = int_to_ptr.vmem [resolvable:$true] %s34
      %37 = dma.hbm_to_vmem [thread:$0]  %s33, 16, %s35, [#allocation6]
    $region9: #{tpu_custom_call.1} parent=1 // pred_fallthru
      _
    // Predicated region
    $region10: #{tpu_custom_call.1} parent=1 // pred_check
      _
    $region11: #{tpu_custom_call.1} parent=1 // pred_check_branch
      %39 = sbr.rel (0) target = $region13
    $region12: #{tpu_custom_call.1} parent=1 // pred_region
      _
    $region13: #{tpu_custom_call.1} parent=1 // pred_fallthru
      _
    // Predicated region
    $region14: #{tpu_custom_call.1} parent=1 // pred_check
      _
    $region15: #{tpu_custom_call.1} parent=1 // pred_check_branch
      %41 = sbr.rel (0) target = $region17
    $region16: #{tpu_custom_call.1} parent=1 // pred_region
      %43 = dma.done [#allocation3], 256
    $region17: #{tpu_custom_call.1} parent=1 // pred_fallthru
      _
    // Predicated region
    $region18: #{tpu_custom_call.1} parent=1 // pred_check
      _
    $region19: #{tpu_custom_call.1} parent=1 // pred_check_branch
      %45 = sbr.rel (0) target = $region21
    $region20: #{tpu_custom_call.1} parent=1 // pred_region
      %47 = dma.done [#allocation6], 16
    $region21: #{tpu_custom_call.1} parent=1 // pred_fallthru
      _
    %v48 = vld [vmem:[#allocation2] sm:$0xff]
    %v49 = vld [vmem:[#allocation2 + $0x8] sm:$0xff]
    %v50 = vld [vmem:[#allocation5] sm:$0x1]
    %v51 = vld [vmem:[%s2] sm:$0x1]
    %v52 = vadd.f32 %v48, 1.0
    %v53 = vadd.f32 %v49, 1.0
    %v54 = vmul.f32 %v50, 0.5
    %v56 = vperm.slane %v54, 0
    %v58 = vmul.f32 %v52, %v56
    %v59 = vmul.f32 %v53, %v56
    %v60 = vsub.f32 %v58, 0.5
    %v61 = vsub.f32 %v59, 0.5
    %v62 = vceil.f32 %v60
    %v63 = vceil.f32 %v61
    %v64 = vmax.f32 %v62, 0.0
    %v65 = vmax.f32 %v63, 0.0
    %v67 = vperm.slane %v50, 0
    %v69 = vmin.f32 %v67, %v64
    %v70 = vmin.f32 %v67, %v65
    %v72 = vperm.slane %v51, 0
    %v74 = vmul.f32 %v69, %v72
    %v75 = vmul.f32 %v70, %v72
    %v76 = vsub.f32 %v74, 1.0
    %v77 = vsub.f32 %v75, 1.0
    %78 = vst [vmem:[#allocation7] sm:$0xff] %v76
    %79 = vst [vmem:[#allocation7 + $0x8] sm:$0xff] %v77
    %v80 = vcvt.f32.s32.to.zero.pseudo %v69
    %v81 = vcvt.f32.s32.to.zero.pseudo %v70
    %v82 = vpack.c.b16 %v80, %v80
    %v83 = vpack.c.b8 %v82, %v82
    %v84 = vpack.c.b16 %v81, %v81
    %v85 = vpack.c.b8 %v84, %v84
    %86 = vst [vmem:[#allocation8] sm:$0x3] %v83
    %87 = vst [vmem:[#allocation8 + $0x2] sm:$0x3] %v85
    // Predicated region
    $region22: #{tpu_custom_call.1} parent=1 // pred_check
      _
    $region23: #{tpu_custom_call.1} parent=1 // pred_check_branch
      %89 = sbr.rel (0) target = $region25
    $region24: #{tpu_custom_call.1} parent=1 // pred_region
      %91 = vsyncadd [#allocation4], 0
      %s92 = sshll.u32 [#allocation7], 4
      %s93 = int_to_ptr.vmem [resolvable:$true] %s92
      %s94 = sshll.u32 %s3, 4
      %s95 = int_to_ptr.hbm [resolvable:$true] %s94
      %100 = dma.vmem_to_hbm [thread:$0]  %s93, 256, %s95, [#allocation4], 128, 128, 8
    $region25: #{tpu_custom_call.1} parent=1 // pred_fallthru
      _
    // Predicated region
    $region26: #{tpu_custom_call.1} parent=1 // pred_check
      _
    $region27: #{tpu_custom_call.1} parent=1 // pred_check_branch
      %102 = sbr.rel (0) target = $region29
    $region28: #{tpu_custom_call.1} parent=1 // pred_region
      %104 = vsyncadd [#allocation9], 0
      %s105 = sshll.u32 [#allocation8], 4
      %s106 = int_to_ptr.vmem [resolvable:$true] %s105
      %s107 = sshll.u32 %s4, 4
      %s108 = int_to_ptr.hbm [resolvable:$true] %s107
      %113 = dma.vmem_to_hbm [thread:$0]  %s106, 64, %s108, [#allocation9], 32, 32, 2
    $region29: #{tpu_custom_call.1} parent=1 // pred_fallthru
      _
    // Predicated region
    $region30: #{tpu_custom_call.1} parent=1 // pred_check
      _
    $region31: #{tpu_custom_call.1} parent=1 // pred_check_branch
      %115 = sbr.rel (0) target = $region33
    $region32: #{tpu_custom_call.1} parent=1 // pred_region
      %117 = dma.done [#allocation4], 256
    $region33: #{tpu_custom_call.1} parent=1 // pred_fallthru
      _
    // Predicated region
    $region34: #{tpu_custom_call.1} parent=1 // pred_check
      _
    $region35: #{tpu_custom_call.1} parent=1 // pred_check_branch
      %119 = sbr.rel (0) target = $region37
    $region36: #{tpu_custom_call.1} parent=1 // pred_region
      %121 = dma.done [#allocation9], 64
    $region37: #{tpu_custom_call.1} parent=1 // pred_fallthru
      _
    %122 = vsyncpa [#allocation3], 1
    %123 = vsyncpa [#allocation6], 1
    %124 = vsyncpa [#allocation4], 1
    %125 = vsyncpa [#allocation9], 1

</llo_original>
